<compile_context>
chip_gen: v6e
topology: v6e:2x2x1
jax: 0.10.0
libtpu: 0.0.40
codegen_flags: <defaults>
</compile_context>

<pallas_src>
import jax
import jax.numpy as jnp
from jax.experimental import pallas as pl
from jax.experimental.pallas import tpu as pltpu


def _new_layer_kernel(x1_ref, x2_ref, w1a_ref, w1b_ref, b1_ref,
                      w2_ref, b2_ref, out_ref):
    # x1/x2 blocks: (TB, H); w1a/w1b: (H, H); b1: (1, H); w2: (1, H); b2: (1, 1)
    x1 = x1_ref[...]
    x2 = x2_ref[...]

    # fc1: cat([x1, x2], dim=1) @ W1.T + b1  ==  x1 @ W1a + x2 @ W1b + b1
    h = jnp.dot(x1, w1a_ref[...], preferred_element_type=jnp.float32)
    h = h + jnp.dot(x2, w1b_ref[...], preferred_element_type=jnp.float32)
    h = h + b1_ref[...]
    h = jnp.maximum(h, 0.0)                                   # ReLU (VPU)

    # fc2: h @ W2.T + b2 with W2 of shape (1, H)  ->  per-row lane reduce (XLU)
    out = jnp.sum(h * w2_ref[...], axis=1, keepdims=True) + b2_ref[...]
    out_ref[...] = out.astype(out_ref.dtype)


def new_layer_forward(input_1, input_2, w1, b1, w2, b2,
                      *, max_block_rows=1024,
                      vmem_budget_bytes=24 * 1024 * 1024):
    """Pallas forward of NewLayer.

    input_1, input_2: (B, H) float32
    w1: (H, 2H), b1: (H,)   -- fc1 (PyTorch layout: out_features x in_features)
    w2: (1, H),  b2: (1,)   -- fc2
    returns: (B, 1) float32
    """
    B, H = input_1.shape
    assert input_2.shape == (B, H)
    assert w1.shape == (H, 2 * H) and b1.shape == (H,)
    assert w2.shape == (1, H) and b2.shape == (1,)

    dt = input_1.dtype
    # Split + transpose fc1 weight outside the kernel so the concat never
    # exists and the in-kernel dots contract on the natural (row-major) axis.
    w1a = jnp.transpose(w1[:, :H]).astype(dt)      # (H, H), multiplies input_1
    w1b = jnp.transpose(w1[:, H:]).astype(dt)      # (H, H), multiplies input_2
    b1r = b1.reshape(1, H).astype(dt)
    w2r = w2.reshape(1, H).astype(dt)
    b2r = b2.reshape(1, 1).astype(dt)

    # --- choose the batch tile (TB rows per grid step) from a VMEM budget ---
    itemsize = 4
    # grid-invariant operands (conservatively assume double-buffered)
    weight_bytes = 2 * (2 * H * H + 2 * H + 1) * itemsize
    # TODO(synk): if hidden_dim grows so large the (H, H) weight halves no
    # longer fit VMEM, add an extra grid axis tiling the fc1 output columns.
    assert weight_bytes < vmem_budget_bytes, (
        "hidden_dim too large for the single-level tiling in this kernel")
    # double-buffered x1, x2, out per batch row (+ f32 intermediate h)
    per_row_bytes = (2 * (2 * H + 1) + H) * itemsize
    tb = (vmem_budget_bytes - weight_bytes) // max(per_row_bytes, 1)
    tb = int(max(8, min(max_block_rows, tb)))
    tb -= tb % 8                                   # sublane-aligned blocks
    if B <= tb:
        tb = B                                     # single (full) block
    grid = (pl.cdiv(B, tb),)

    const = lambda i: (0, 0)                       # grid-invariant operands

    return pl.pallas_call(
        _new_layer_kernel,
        out_shape=jax.ShapeDtypeStruct((B, 1), dt),
        grid=grid,
        in_specs=[
            pl.BlockSpec((tb, H), lambda i: (i, 0)),   # input_1 tile
            pl.BlockSpec((tb, H), lambda i: (i, 0)),   # input_2 tile
            pl.BlockSpec((H, H), const),               # W1 first half (T)
            pl.BlockSpec((H, H), const),               # W1 second half (T)
            pl.BlockSpec((1, H), const),               # b1
            pl.BlockSpec((1, H), const),               # W2 row
            pl.BlockSpec((1, 1), const),               # b2
        ],
        out_specs=pl.BlockSpec((tb, 1), lambda i: (i, 0)),
        compiler_params=pltpu.CompilerParams(
            dimension_semantics=("parallel",),
            vmem_limit_bytes=32 * 1024 * 1024,
        ),
    )(input_1, input_2, w1a, w1b, b1r, w2r, b2r)


def _reference_forward(input_1, input_2, w1, b1, w2, b2):
    # plain-JAX replica of NewLayer.forward
    x = jnp.concatenate([input_1, input_2], axis=1)        # (B, 2H)
    h = jnp.maximum(x @ w1.T + b1, 0.0)                    # fc1 + ReLU
    return h @ w2.T + b2                                   # fc2 -> (B, 1)


if __name__ == "__main__":
    key = jax.random.PRNGKey(0)
    B, H = 8, 32                                  # batch, hidden_dim

    k1, k2, kw1, kb1, kw2, kb2 = jax.random.split(key, 6)
    input_1 = jax.random.normal(k1, (B, H), dtype=jnp.float32)
    input_2 = jax.random.normal(k2, (B, H), dtype=jnp.float32)

    # nn.Linear-style parameters (out_features x in_features)
    w1 = jax.random.normal(kw1, (H, 2 * H), dtype=jnp.float32) * 0.1
    b1 = jax.random.normal(kb1, (H,), dtype=jnp.float32) * 0.1
    w2 = jax.random.normal(kw2, (1, H), dtype=jnp.float32) * 0.1
    b2 = jax.random.normal(kb2, (1,), dtype=jnp.float32) * 0.1

    out = new_layer_forward(input_1, input_2, w1, b1, w2, b2)
    jax.block_until_ready(out)

    out_ref = _reference_forward(input_1, input_2, w1, b1, w2, b2)
    assert out.shape == (B, 1)
    assert jnp.allclose(out, out_ref, atol=1e-4, rtol=1e-4), "mismatch vs reference"

    print("KERNEL_OK")
</pallas_src>

<mosaic_0001>
module attributes {stable_mosaic.version = 11 : i64} {
  func.func @_new_layer_kernel(%arg0: i32, %arg1: memref<8x32xf32, #tpu.memory_space<vmem>>, %arg2: memref<8x32xf32, #tpu.memory_space<vmem>>, %arg3: memref<32x32xf32, #tpu.memory_space<vmem>>, %arg4: memref<32x32xf32, #tpu.memory_space<vmem>>, %arg5: memref<1x32xf32, #tpu.memory_space<vmem>>, %arg6: memref<1x32xf32, #tpu.memory_space<vmem>>, %arg7: memref<1x1xf32, #tpu.memory_space<vmem>>, %arg8: memref<8x1xf32, #tpu.memory_space<vmem>>) attributes {dimension_semantics = [#tpu.dimension_semantics<parallel>], iteration_bounds = array<i64: 1>, scalar_prefetch = 0 : i64, scratch_operands = 0 : i64, tpu.core_type = #tpu.core_type<tc>, window_params = [{transform_indices = @transform_0, window_bounds = array<i64: 8, 32>}, {transform_indices = @transform_1, window_bounds = array<i64: 8, 32>}, {pipeline_mode = #tpu.pipeline_mode<synchronous>, transform_indices = @transform_2, window_bounds = array<i64: 32, 32>}, {pipeline_mode = #tpu.pipeline_mode<synchronous>, transform_indices = @transform_3, window_bounds = array<i64: 32, 32>}, {pipeline_mode = #tpu.pipeline_mode<synchronous>, transform_indices = @transform_4, window_bounds = array<i64: 1, 32>}, {pipeline_mode = #tpu.pipeline_mode<synchronous>, transform_indices = @transform_5, window_bounds = array<i64: 1, 32>}, {pipeline_mode = #tpu.pipeline_mode<synchronous>, transform_indices = @transform_6, window_bounds = array<i64: 1, 1>}, {transform_indices = @transform_7, window_bounds = array<i64: 8, 1>}]} {
    %c0 = arith.constant 0 : index
    %c0_0 = arith.constant 0 : index
    %0 = vector.load %arg1[%c0, %c0_0] : memref<8x32xf32, #tpu.memory_space<vmem>>, vector<8x32xf32>
    %c0_1 = arith.constant 0 : index
    %c0_2 = arith.constant 0 : index
    %1 = vector.load %arg2[%c0_1, %c0_2] : memref<8x32xf32, #tpu.memory_space<vmem>>, vector<8x32xf32>
    %c0_3 = arith.constant 0 : index
    %c0_4 = arith.constant 0 : index
    %2 = vector.load %arg3[%c0_3, %c0_4] : memref<32x32xf32, #tpu.memory_space<vmem>>, vector<32x32xf32>
    %cst = arith.constant dense<0.000000e+00> : vector<8x32xf32>
    %3 = tpu.matmul %0, %2, %cst {dimension_numbers = #tpu.dot_dimension_numbers<[1], [0], [0], [1], [0, 0, 1, 1], [], []>} : vector<8x32xf32>, vector<32x32xf32>, vector<8x32xf32> -> vector<8x32xf32>
    %c0_5 = arith.constant 0 : index
    %c0_6 = arith.constant 0 : index
    %4 = vector.load %arg4[%c0_5, %c0_6] : memref<32x32xf32, #tpu.memory_space<vmem>>, vector<32x32xf32>
    %cst_7 = arith.constant dense<0.000000e+00> : vector<8x32xf32>
    %5 = tpu.matmul %1, %4, %cst_7 {dimension_numbers = #tpu.dot_dimension_numbers<[1], [0], [0], [1], [0, 0, 1, 1], [], []>} : vector<8x32xf32>, vector<32x32xf32>, vector<8x32xf32> -> vector<8x32xf32>
    %6 = arith.addf %3, %5 : vector<8x32xf32>
    %c0_8 = arith.constant 0 : index
    %c0_9 = arith.constant 0 : index
    %7 = vector.load %arg5[%c0_8, %c0_9] : memref<1x32xf32, #tpu.memory_space<vmem>>, vector<1x32xf32>
    %8 = vector.broadcast %7 : vector<1x32xf32> to vector<8x32xf32>
    %9 = arith.addf %6, %8 : vector<8x32xf32>
    %cst_10 = arith.constant 0.000000e+00 : f32
    %10 = vector.broadcast %cst_10 : f32 to vector<8x32xf32>
    %11 = arith.maximumf %9, %10 : vector<8x32xf32>
    %c0_11 = arith.constant 0 : index
    %c0_12 = arith.constant 0 : index
    %12 = vector.load %arg6[%c0_11, %c0_12] : memref<1x32xf32, #tpu.memory_space<vmem>>, vector<1x32xf32>
    %13 = vector.broadcast %12 : vector<1x32xf32> to vector<8x32xf32>
    %14 = arith.mulf %11, %13 : vector<8x32xf32>
    %cst_13 = arith.constant dense<0.000000e+00> : vector<8xf32>
    %15 = vector.multi_reduction <add>, %14, %cst_13 [1] : vector<8x32xf32> to vector<8xf32>
    %16 = vector.shape_cast %15 : vector<8xf32> to vector<8x1xf32>
    %c0_14 = arith.constant 0 : index
    %c0_15 = arith.constant 0 : index
    %17 = vector.load %arg7[%c0_14, %c0_15] : memref<1x1xf32, #tpu.memory_space<vmem>>, vector<1x1xf32>
    %18 = vector.broadcast %17 : vector<1x1xf32> to vector<8x1xf32>
    %19 = arith.addf %16, %18 : vector<8x1xf32>
    %c0_16 = arith.constant 0 : index
    %c0_17 = arith.constant 0 : index
    %20 = vector.load %arg8[%c0_16, %c0_17] : memref<8x1xf32, #tpu.memory_space<vmem>>, vector<8x1xf32>
    tpu.vector_store %arg8[%c0_16, %c0_17], %19 {strides = array<i32>} : memref<8x1xf32, #tpu.memory_space<vmem>>, vector<8x1xf32>,
    return
  }
  func.func @transform_0(%arg0: i32) -> (i32, i32) {
    %c0_i32 = arith.constant 0 : i32
    %c0_i32_0 = arith.constant 0 : i32
    return %arg0, %c0_i32 : i32, i32
  }
  func.func @transform_1(%arg0: i32) -> (i32, i32) {
    %c0_i32 = arith.constant 0 : i32
    %c0_i32_0 = arith.constant 0 : i32
    return %arg0, %c0_i32 : i32, i32
  }
  func.func @transform_2(%arg0: i32) -> (i32, i32) {
    %c0_i32 = arith.constant 0 : i32
    %c0_i32_0 = arith.constant 0 : i32
    %c0_i32_1 = arith.constant 0 : i32
    return %c0_i32, %c0_i32_0 : i32, i32
  }
  func.func @transform_3(%arg0: i32) -> (i32, i32) {
    %c0_i32 = arith.constant 0 : i32
    %c0_i32_0 = arith.constant 0 : i32
    %c0_i32_1 = arith.constant 0 : i32
    return %c0_i32, %c0_i32_0 : i32, i32
  }
  func.func @transform_4(%arg0: i32) -> (i32, i32) {
    %c0_i32 = arith.constant 0 : i32
    %c0_i32_0 = arith.constant 0 : i32
    %c0_i32_1 = arith.constant 0 : i32
    return %c0_i32, %c0_i32_0 : i32, i32
  }
  func.func @transform_5(%arg0: i32) -> (i32, i32) {
    %c0_i32 = arith.constant 0 : i32
    %c0_i32_0 = arith.constant 0 : i32
    %c0_i32_1 = arith.constant 0 : i32
    return %c0_i32, %c0_i32_0 : i32, i32
  }
  func.func @transform_6(%arg0: i32) -> (i32, i32) {
    %c0_i32 = arith.constant 0 : i32
    %c0_i32_0 = arith.constant 0 : i32
    %c0_i32_1 = arith.constant 0 : i32
    return %c0_i32, %c0_i32_0 : i32, i32
  }
  func.func @transform_7(%arg0: i32) -> (i32, i32) {
    %c0_i32 = arith.constant 0 : i32
    %c0_i32_0 = arith.constant 0 : i32
    return %arg0, %c0_i32 : i32, i32
  }
}

</mosaic_0001>

<llo_original>
// kernel: tpu_custom_call.1
$region0: #{tpu_custom_call.1}
  #allocation0 [shape = 'u32[]', space=smem, size = 0x4, offset = 0x4, fixed_abs, tag = 'smem constant byte address 0x4 - core index']
  #allocation1 [shape = 'u32[144,128]{1,0:T(1,128)}', space=vmem, size = 0x12000, scoped, tag = 'internal scratch']
  #allocation2 [shape = 'f32[1,1]{1,0:T(1,128)S(1)}', space=vmem, size = 0x200, scoped, tag = 'scoped memory for tpu_custom_call.1']
  %s0 = inlined_call_operand.hbm [shape: f32[8,32], index: 0, kind: input, shape index: {}]
  %s1 = inlined_call_operand.hbm [shape: f32[8,32], index: 1, kind: input, shape index: {}]
  %s2 = inlined_call_operand.hbm [shape: f32[32,32], index: 2, kind: input, shape index: {}]
  %s3 = inlined_call_operand.hbm [shape: f32[32,32], index: 3, kind: input, shape index: {}]
  %s4 = inlined_call_operand.vmem [shape: f32[1,32], index: 4, kind: input, shape index: {}]
  %s5 = inlined_call_operand.vmem [shape: f32[1,32], index: 5, kind: input, shape index: {}]
  %s6 = inlined_call_operand.<no memory space> [shape: f32[1,1], index: 6, kind: input, shape index: {}]
  %s7 = inlined_call_operand.vmem [shape: f32[8,1], index: 7, kind: output, shape index: {}]
  %s8 = sld [smem:[#allocation0]]
  $region54: #{tpu_custom_call.1} parent=0
    _
  %s10 = ssub.s32 1, %s8
  %s11 = scalar_select 0, %s10, %s8
  %v12 = vstv %s6
  %13 = vst [vmem:[#allocation2] sm:$0x1] %v12
  $region1: #{tpu_custom_call.1} parent=0
    #allocation3 [shape = 'u8[4096]{0}', space=vmem, size = 0x1000, scoped, tag = 'input window, operand 0, single buffered']
    #allocation4 [shape = 's32[1]{0}', space=sflag, size = 0x4, scoped, tag = 'scoped memory for tpu_custom_call.1']
    #allocation5 [shape = 'u8[4096]{0}', space=vmem, size = 0x1000, scoped, tag = 'input window, operand 1, single buffered']
    #allocation6 [shape = 's32[1]{0}', space=sflag, size = 0x4, scoped, tag = 'scoped memory for tpu_custom_call.1']
    #allocation7 [shape = 'u8[16384]{0}', space=vmem, size = 0x4000, scoped, tag = 'input window, operand 2, single buffered']
    #allocation8 [shape = 'u8[16384]{0}', space=vmem, size = 0x4000, scoped, tag = 'input window, operand 3, single buffered']
    #allocation9 [shape = 's32[1]{0}', space=sflag, size = 0x4, scoped, tag = 'scoped memory for tpu_custom_call.1']
    %14 = vsyncpa [#allocation4], 0
    %15 = vsyncpa [#allocation6], 0
    %16 = vsyncpa [#allocation9], 0
    // Predicated region
    $region2: #{tpu_custom_call.1} parent=1 // pred_check
      _
    $region3: #{tpu_custom_call.1} parent=1 // pred_check_branch
      %18 = sbr.rel (0) target = $region5
    $region4: #{tpu_custom_call.1} parent=1 // pred_region
      %s20 = ssub.s32 128, 128
      %21 = vsyncadd [#allocation4], %s20
      %s23 = sshll.u32 [#allocation3], 4
      %s24 = int_to_ptr.vmem [resolvable:$true] %s23
      %26 = dma.hbm_to_vmem [thread:$0]  %s0, 128, %s24, [#allocation4]
    $region5: #{tpu_custom_call.1} parent=1 // pred_fallthru
      _
    // Predicated region
    $region6: #{tpu_custom_call.1} parent=1 // pred_check
      _
    $region7: #{tpu_custom_call.1} parent=1 // pred_check_branch
      %28 = sbr.rel (0) target = $region9
    $region8: #{tpu_custom_call.1} parent=1 // pred_region
      %s30 = ssub.s32 128, 128
      %31 = vsyncadd [#allocation6], %s30
      %s33 = sshll.u32 [#allocation5], 4
      %s34 = int_to_ptr.vmem [resolvable:$true] %s33
      %36 = dma.hbm_to_vmem [thread:$0]  %s1, 128, %s34, [#allocation6]
    $region9: #{tpu_custom_call.1} parent=1 // pred_fallthru
      _
    // Predicated region
    $region10: #{tpu_custom_call.1} parent=1 // pred_check
      _
    $region11: #{tpu_custom_call.1} parent=1 // pred_check_branch
      %38 = sbr.rel (0) target = $region13
    $region12: #{tpu_custom_call.1} parent=1 // pred_region
      %s40 = ssub.s32 512, 512
      %41 = vsyncadd [#allocation6], %s40
      %s42 = sshll.u32 [#allocation7], 4
      %s43 = int_to_ptr.vmem [resolvable:$true] %s42
      %48 = dma.hbm_to_vmem [thread:$0]  %s2, 512, %s43, [#allocation6], 128, 128, 8
    $region13: #{tpu_custom_call.1} parent=1 // pred_fallthru
      _
    // Predicated region
    $region14: #{tpu_custom_call.1} parent=1 // pred_check
      _
    $region15: #{tpu_custom_call.1} parent=1 // pred_check_branch
      %50 = sbr.rel (0) target = $region17
    $region16: #{tpu_custom_call.1} parent=1 // pred_region
      %s52 = ssub.s32 512, 512
      %53 = vsyncadd [#allocation9], %s52
      %s54 = sshll.u32 [#allocation8], 4
      %s55 = int_to_ptr.vmem [resolvable:$true] %s54
      %60 = dma.hbm_to_vmem [thread:$0]  %s3, 512, %s55, [#allocation9], 128, 128, 8
    $region17: #{tpu_custom_call.1} parent=1 // pred_fallthru
      _
    // Predicated region
    $region18: #{tpu_custom_call.1} parent=1 // pred_check
      _
    $region19: #{tpu_custom_call.1} parent=1 // pred_check_branch
      %62 = sbr.rel (0) target = $region21
    $region20: #{tpu_custom_call.1} parent=1 // pred_region
      _
    $region21: #{tpu_custom_call.1} parent=1 // pred_fallthru
      _
    // Predicated region
    $region22: #{tpu_custom_call.1} parent=1 // pred_check
      _
    $region23: #{tpu_custom_call.1} parent=1 // pred_check_branch
      %64 = sbr.rel (0) target = $region25
    $region24: #{tpu_custom_call.1} parent=1 // pred_region
      _
    $region25: #{tpu_custom_call.1} parent=1 // pred_fallthru
      _
    // Predicated region
    $region26: #{tpu_custom_call.1} parent=1 // pred_check
      _
    $region27: #{tpu_custom_call.1} parent=1 // pred_check_branch
      %66 = sbr.rel (0) target = $region29
    $region28: #{tpu_custom_call.1} parent=1 // pred_region
      _
    $region29: #{tpu_custom_call.1} parent=1 // pred_fallthru
      _
    // Predicated region
    $region30: #{tpu_custom_call.1} parent=1 // pred_check
      _
    $region31: #{tpu_custom_call.1} parent=1 // pred_check_branch
      %68 = sbr.rel (0) target = $region33
    $region32: #{tpu_custom_call.1} parent=1 // pred_region
      %69 = dma.done [#allocation4], 128
    $region33: #{tpu_custom_call.1} parent=1 // pred_fallthru
      _
    // Predicated region
    $region34: #{tpu_custom_call.1} parent=1 // pred_check
      _
    $region35: #{tpu_custom_call.1} parent=1 // pred_check_branch
      %71 = sbr.rel (0) target = $region37
    $region36: #{tpu_custom_call.1} parent=1 // pred_region
      %72 = dma.done [#allocation6], 128
    $region37: #{tpu_custom_call.1} parent=1 // pred_fallthru
      _
    // Predicated region
    $region38: #{tpu_custom_call.1} parent=1 // pred_check
      _
    $region39: #{tpu_custom_call.1} parent=1 // pred_check_branch
      %74 = sbr.rel (0) target = $region41
    $region40: #{tpu_custom_call.1} parent=1 // pred_region
      %75 = dma.done [#allocation6], 512
    $region41: #{tpu_custom_call.1} parent=1 // pred_fallthru
      _
    // Predicated region
    $region42: #{tpu_custom_call.1} parent=1 // pred_check
      _
    $region43: #{tpu_custom_call.1} parent=1 // pred_check_branch
      %77 = sbr.rel (0) target = $region45
    $region44: #{tpu_custom_call.1} parent=1 // pred_region
      %78 = dma.done [#allocation9], 512
    $region45: #{tpu_custom_call.1} parent=1 // pred_fallthru
      _
    %v79 = vld [vmem:[#allocation3] sm:$0xff]
    %v80 = vld [vmem:[#allocation5] sm:$0xff]
    %v81 = vld [vmem:[#allocation7] sm:$0xff]
    %v82 = vld [vmem:[#allocation7 + $0x8] sm:$0xff]
    %v83 = vld [vmem:[#allocation7 + $0x10] sm:$0xff]
    %v84 = vld [vmem:[#allocation7 + $0x18] sm:$0xff]
    %v85 = vld [vmem:[#allocation8] sm:$0xff]
    %v86 = vld [vmem:[#allocation8 + $0x8] sm:$0xff]
    %v87 = vld [vmem:[#allocation8 + $0x10] sm:$0xff]
    %v88 = vld [vmem:[#allocation8 + $0x18] sm:$0xff]
    %vm89 = vcmask 261120
    %v91 = vsel %vm89, %v80, 0
    %93 = vmatprep.subr.mxu0 0.0
    %94 = vmatpush1.msra.mxu0 0.0
    %95 = vmatprep.subr.mxu0 0.0
    %96 = vmatpush1.msra.mxu0 0.0
    %97 = vmatprep.subr.mxu0 0.0
    %98 = vmatpush1.msra.mxu0 0.0
    %99 = vmatprep.subr.mxu0 0.0
    %100 = vmatpush1.msra.mxu0 0.0
    %101 = vmatprep.subr.mxu0 0.0
    %102 = vmatpush1.msra.mxu0 0.0
    %103 = vmatprep.subr.mxu0 0.0
    %104 = vmatpush1.msra.mxu0 0.0
    %105 = vmatprep.subr.mxu0 0.0
    %106 = vmatpush1.msra.mxu0 0.0
    %107 = vmatprep.subr.mxu0 0.0
    %108 = vmatpush1.msra.mxu0 0.0
    %109 = vmatprep.subr.mxu0 0.0
    %110 = vmatpush1.msra.mxu0 0.0
    %111 = vmatprep.subr.mxu0 0.0
    %112 = vmatpush1.msra.mxu0 0.0
    %113 = vmatprep.subr.mxu0 0.0
    %114 = vmatpush1.msra.mxu0 0.0
    %115 = vmatprep.subr.mxu0 0.0
    %116 = vmatpush1.msra.mxu0 0.0
    %117 = vmatprep.subr.mxu0 0.0
    %118 = vmatpush1.msra.mxu0 %v88
    %119 = vmatprep.subr.mxu0 0.0
    %120 = vmatpush1.msra.mxu0 %v87
    %121 = vmatprep.subr.mxu0 0.0
    %122 = vmatpush1.msra.mxu0 %v86
    %123 = vmatprep.subr.mxu0 0.0
    %124 = vmatpush1.msra.mxu0 %v85
    %125 = vmatprep.subr.mxu0 0.0
    %126 = vmatpush2.msra.mxu0 0.0
    %127 = vmatprep.subr.mxu0 0.0
    %128 = vmatpush2.msra.mxu0 0.0
    %129 = vmatprep.subr.mxu0 0.0
    %130 = vmatpush2.msra.mxu0 0.0
    %131 = vmatprep.subr.mxu0 0.0
    %132 = vmatpush2.msra.mxu0 0.0
    %133 = vmatprep.subr.mxu0 0.0
    %134 = vmatpush2.msra.mxu0 0.0
    %135 = vmatprep.subr.mxu0 0.0
    %136 = vmatpush2.msra.mxu0 0.0
    %137 = vmatprep.subr.mxu0 0.0
    %138 = vmatpush2.msra.mxu0 0.0
    %139 = vmatprep.subr.mxu0 0.0
    %140 = vmatpush2.msra.mxu0 0.0
    %141 = vmatprep.subr.mxu0 0.0
    %142 = vmatpush2.msra.mxu0 0.0
    %143 = vmatprep.subr.mxu0 0.0
    %144 = vmatpush2.msra.mxu0 0.0
    %145 = vmatprep.subr.mxu0 0.0
    %146 = vmatpush2.msra.mxu0 0.0
    %147 = vmatprep.subr.mxu0 0.0
    %148 = vmatpush2.msra.mxu0 0.0
    %149 = vmatprep.subr.mxu0 0.0
    %150 = vmatpush2.msra.mxu0 0.0
    %151 = vmatprep.subr.mxu0 0.0
    %152 = vmatpush2.msra.mxu0 0.0
    %153 = vmatprep.subr.mxu0 0.0
    %154 = vmatpush2.msra.mxu0 0.0
    %155 = vmatprep.subr.mxu0 0.0
    %156 = vmatpush2.msra.mxu0 0.0
    %157 = vmatprep.mubr.f32.mxu0 0.0
    %158 = vmatmul.mubr.f32.gmra.mxu0 %v91
    %v159 = vpop.f32.mrf.mxu0
    %v160 = vadd.f32 0.0, %v159
    %v161 = vpop.f32.mrf.mxu0
    %162 = vdwg.mxu0
    %v164 = vsel %vm89, %v79, 0
    %166 = vmatprep.subr.mxu0 0.0
    %167 = vmatpush1.msra.mxu0 0.0
    %168 = vmatprep.subr.mxu0 0.0
    %169 = vmatpush1.msra.mxu0 0.0
    %170 = vmatprep.subr.mxu0 0.0
    %171 = vmatpush1.msra.mxu0 0.0
    %172 = vmatprep.subr.mxu0 0.0
    %173 = vmatpush1.msra.mxu0 0.0
    %174 = vmatprep.subr.mxu0 0.0
    %175 = vmatpush1.msra.mxu0 0.0
    %176 = vmatprep.subr.mxu0 0.0
    %177 = vmatpush1.msra.mxu0 0.0
    %178 = vmatprep.subr.mxu0 0.0
    %179 = vmatpush1.msra.mxu0 0.0
    %180 = vmatprep.subr.mxu0 0.0
    %181 = vmatpush1.msra.mxu0 0.0
    %182 = vmatprep.subr.mxu0 0.0
    %183 = vmatpush1.msra.mxu0 0.0
    %184 = vmatprep.subr.mxu0 0.0
    %185 = vmatpush1.msra.mxu0 0.0
    %186 = vmatprep.subr.mxu0 0.0
    %187 = vmatpush1.msra.mxu0 0.0
    %188 = vmatprep.subr.mxu0 0.0
    %189 = vmatpush1.msra.mxu0 0.0
    %190 = vmatprep.subr.mxu0 0.0
    %191 = vmatpush1.msra.mxu0 %v84
    %192 = vmatprep.subr.mxu0 0.0
    %193 = vmatpush1.msra.mxu0 %v83
    %194 = vmatprep.subr.mxu0 0.0
    %195 = vmatpush1.msra.mxu0 %v82
    %196 = vmatprep.subr.mxu0 0.0
    %197 = vmatpush1.msra.mxu0 %v81
    %198 = vmatprep.subr.mxu0 0.0
    %199 = vmatpush2.msra.mxu0 0.0
    %200 = vmatprep.subr.mxu0 0.0
    %201 = vmatpush2.msra.mxu0 0.0
    %202 = vmatprep.subr.mxu0 0.0
    %203 = vmatpush2.msra.mxu0 0.0
    %204 = vmatprep.subr.mxu0 0.0
    %205 = vmatpush2.msra.mxu0 0.0
    %206 = vmatprep.subr.mxu0 0.0
    %207 = vmatpush2.msra.mxu0 0.0
    %208 = vmatprep.subr.mxu0 0.0
    %209 = vmatpush2.msra.mxu0 0.0
    %210 = vmatprep.subr.mxu0 0.0
    %211 = vmatpush2.msra.mxu0 0.0
    %212 = vmatprep.subr.mxu0 0.0
    %213 = vmatpush2.msra.mxu0 0.0
    %214 = vmatprep.subr.mxu0 0.0
    %215 = vmatpush2.msra.mxu0 0.0
    %216 = vmatprep.subr.mxu0 0.0
    %217 = vmatpush2.msra.mxu0 0.0
    %218 = vmatprep.subr.mxu0 0.0
    %219 = vmatpush2.msra.mxu0 0.0
    %220 = vmatprep.subr.mxu0 0.0
    %221 = vmatpush2.msra.mxu0 0.0
    %222 = vmatprep.subr.mxu0 0.0
    %223 = vmatpush2.msra.mxu0 0.0
    %224 = vmatprep.subr.mxu0 0.0
    %225 = vmatpush2.msra.mxu0 0.0
    %226 = vmatprep.subr.mxu0 0.0
    %227 = vmatpush2.msra.mxu0 0.0
    %228 = vmatprep.subr.mxu0 0.0
    %229 = vmatpush2.msra.mxu0 0.0
    %230 = vmatprep.mubr.f32.mxu0 0.0
    %231 = vmatmul.mubr.f32.gmra.mxu0 %v164
    %v232 = vpop.f32.mrf.mxu0
    %v233 = vadd.f32 %v160, %v232
    %v234 = vpop.f32.mrf.mxu0
    %235 = vdwg.mxu0
    %v236 = vld [vmem:[%s4] sm:$0x1]
    %v238 = vlaneseq
    %v239 = vshrl.u32 %v238, 7
    %v240 = vsub.s32 0, %v239
    %v241 = vrot.slane %v236, %v240
    %v243 = vadd.f32 %v233, %v241
    %v244 = vmax.f32 %v243, 0.0
    %v245 = vld [vmem:[%s5] sm:$0x1]
    %v247 = vlaneseq
    %v248 = vshrl.u32 %v247, 7
    %v249 = vsub.s32 0, %v248
    %v250 = vrot.slane %v245, %v249
    %v252 = vmul.f32 %v244, %v250
    %v253 = vsel %vm89, %v252, 0.0
    %254 = vadd.xlane.f32.xlu0 %v253
    %v255 = vpop.xlane.xlu0 %254
    %v256 = vld [vmem:[#allocation2] sm:$0x1]
    %v258 = vlaneseq
    %v259 = vshrl.u32 %v258, 7
    %v260 = vsub.s32 0, %v259
    %v261 = vrot.slane %v256, %v260
    %v263 = vadd.f32 %v255, %v261
    %vm264 = vcmask 7168
    %265 = vst.msk [vmem:[%s7] sm:$0xff] %vm264, %v263
    // Predicated region
    $region46: #{tpu_custom_call.1} parent=1 // pred_check
      _
    $region47: #{tpu_custom_call.1} parent=1 // pred_check_branch
      %267 = sbr.rel (0) target = $region49
    $region48: #{tpu_custom_call.1} parent=1 // pred_region
      _
    $region49: #{tpu_custom_call.1} parent=1 // pred_fallthru
      _
    // Predicated region
    $region50: #{tpu_custom_call.1} parent=1 // pred_check
      _
    $region51: #{tpu_custom_call.1} parent=1 // pred_check_branch
      %269 = sbr.rel (0) target = $region53
    $region52: #{tpu_custom_call.1} parent=1 // pred_region
      _
    $region53: #{tpu_custom_call.1} parent=1 // pred_fallthru
      _
    %270 = vsyncpa [#allocation4], 1
    %271 = vsyncpa [#allocation6], 1
    %272 = vsyncpa [#allocation9], 1

</llo_original>
